<compile_context>
chip_gen: v5e
topology: v5e:2x2
jax: 0.10.0
libtpu: 0.0.40
codegen_flags: <defaults>
</compile_context>

<pallas_src>
import jax
import jax.numpy as jnp
from jax.experimental import pallas as pl
from jax.experimental.pallas import tpu as pltpu


# PyTorch layer dims (in, out), in order.
_DIMS = [(16, 128), (128, 128), (128, 256), (256, 256),   # features
         (256, 128), (128, 64), (64, 1)]                  # classifier


def _round_up(x, m):
    return (x + m - 1) // m * m


def _mlp_kernel(x_ref,
                w1_ref, b1_ref,
                w2_ref, b2_ref,
                w3_ref, b3_ref,
                w4_ref, b4_ref,
                w5_ref, b5_ref,
                w6_ref, b6_ref,
                w7_ref, b7_ref,
                o_ref):
    """One batch tile (tb rows) through the whole network.

    x_ref: bf16 [tb, 16].
    w1..w6: bf16 [in, out] (layer 6 zero-padded to 128 outputs); b1..b6: f32 [1, out].
    w7_ref: f32 [1, 128] (transposed + zero-padded last weight); b7_ref: f32 [1, 1].
    """
    def dense_relu(h_bf16, w_ref, b_ref, out_dtype):
        # bf16 x bf16 MXU matmul with f32 accumulation; bias-add / ReLU in f32
        # (v5e VPU has no bf16 arithmetic), then cast down for the next MXU pass.
        y = jnp.dot(h_bf16, w_ref[...], preferred_element_type=jnp.float32)
        return jnp.maximum(y + b_ref[...], 0.0).astype(out_dtype)

    h = x_ref[...]                                         # already bf16
    # features
    h = dense_relu(h, w1_ref, b1_ref, jnp.bfloat16)
    h = dense_relu(h, w2_ref, b2_ref, jnp.bfloat16)
    h = dense_relu(h, w3_ref, b3_ref, jnp.bfloat16)
    h = dense_relu(h, w4_ref, b4_ref, jnp.bfloat16)
    # classifier
    h = dense_relu(h, w5_ref, b5_ref, jnp.bfloat16)
    # Layer-6 output feeds the VPU reduce + sigmoid: keep it in f32 (v5e VPU is f32-only).
    h = dense_relu(h, w6_ref, b6_ref, jnp.float32)         # (tb, 128), last 64 cols zero

    # Final (padded) 128 -> 1 layer: VPU multiply + cross-lane (XLU) reduce,
    # avoiding an almost-empty N=1 MXU pass.
    logits = jnp.sum(h * w7_ref[...], axis=-1, keepdims=True) + b7_ref[...]

    # Numerically stable sigmoid; exp + approx reciprocal ride the EUP slot.
    # Kernel is MXU-bound, so this sparse (tb,1) epilogue lives entirely in
    # EUP/VPU/vst slack; a lane-dense relayout was judged not worth the reshape.
    e = jnp.exp(-jnp.abs(logits))
    r = pl.reciprocal(1.0 + e, approx=True)
    sig = jnp.where(logits >= 0.0, r, e * r)
    o_ref[...] = sig.astype(o_ref.dtype)


def mlp_forward(x, params, *, block_b=2048):
    """x: [B, 16] float32 (already flattened). params: list of (W[in,out], b[out])."""
    B, F = x.shape
    assert F == 16, F

    # --- parameter prep: bf16 weights, lane-dense padding of the tail layers ---
    flat_args = []
    for li, (w, b) in enumerate(params[:-1]):
        if li == 5:  # 128 -> 64 : pad to 128 zero output columns (ReLU keeps them 0)
            w = jnp.pad(w, ((0, 0), (0, 64)))
            b = jnp.pad(b, (0, 64))
        flat_args.append(w.astype(jnp.bfloat16))
        flat_args.append(b.astype(jnp.float32).reshape(1, -1))
    w7, b7 = params[-1]                                               # (64, 1), (1,)
    w7_row = jnp.pad(w7, ((0, 64), (0, 0))).T.astype(jnp.float32)     # (1, 128)
    b7_2d = b7.astype(jnp.float32).reshape(1, 1)
    flat_args.append(w7_row)
    flat_args.append(b7_2d)

    # --- batch tiling ----------------------------------------------------------
    #  * at least cdiv(B, block_b) steps so a tile never exceeds block_b rows;
    #  * at least 2 steps (when B >= 16) so ("parallel",) can split the batch
    #    across v7x's two TensorCores;
    #  * tb = round_up(cdiv(B, n_steps), 8) minimizes padded-row waste.
    n_steps = pl.cdiv(B, block_b)
    if B >= 16:
        n_steps = max(n_steps, 2)
    tb = _round_up(pl.cdiv(B, n_steps), 8)
    Bp = n_steps * tb

    x = x.astype(jnp.bfloat16)            # halves the per-tile x DMA
    if Bp != B:
        x = jnp.pad(x, ((0, Bp - B), (0, 0)))
    grid = (n_steps,)

    in_specs = [pl.BlockSpec((tb, 16), lambda i: (i, 0))]          # x: blocked on batch
    # Params have constant index_maps -> VMEM-resident across the grid.
    # NOTE: the auto-pipeline still allocates a (dead) second buffer per parameter
    # (~330 KiB total); acceptable even under v7x's 64 MiB/TC VMEM, so we keep the
    # default pipeline mode rather than risk single-buffer lowering.
    for a in flat_args:
        in_specs.append(pl.BlockSpec(a.shape, lambda i: (0, 0)))

    flops = 2 * Bp * sum(din * dout for din, dout in _DIMS)
    bytes_accessed = Bp * (16 * 2 + 1 * 4) + sum(int(a.size) * a.dtype.itemsize
                                                 for a in flat_args)
    cost = pl.CostEstimate(flops=flops, transcendentals=2 * Bp,
                           bytes_accessed=bytes_accessed)

    out = pl.pallas_call(
        _mlp_kernel,
        out_shape=jax.ShapeDtypeStruct((Bp, 1), jnp.float32),
        grid=grid,
        in_specs=in_specs,
        out_specs=pl.BlockSpec((tb, 1), lambda i: (i, 0)),
        compiler_params=pltpu.CompilerParams(
            dimension_semantics=("parallel",),       # megacore split on v7x
            vmem_limit_bytes=32 * 1024 * 1024,       # explicit; safe on v5e/v6e/v7x
        ),
        cost_estimate=cost,
    )(x, *flat_args)
    return out[:B]


def init_params(key):
    """Matches the PyTorch init: weight ~ Normal(0, 0.01), bias = 0.
    Weights stored as [in, out] (i.e. transposed vs. nn.Linear), biases as [out]."""
    params = []
    for (din, dout) in _DIMS:
        key, sub = jax.random.split(key)
        w = 0.01 * jax.random.normal(sub, (din, dout), dtype=jnp.float32)
        b = jnp.zeros((dout,), dtype=jnp.float32)
        params.append((w, b))
    return params


def reference_forward(x, params):
    h = x
    for i, (w, b) in enumerate(params):
        h = h @ w + b
        if i < len(params) - 1:
            h = jnp.maximum(h, 0.0)
    return jax.nn.sigmoid(h)


if __name__ == "__main__":
    key = jax.random.PRNGKey(0)
    pkey, xkey, xkey2 = jax.random.split(key, 3)
    params = init_params(pkey)

    # Small-shape run consistent with the module: flatten(x) must yield 16 features.
    B = 8
    x_raw = jax.random.normal(xkey, (B, 4, 2, 2), dtype=jnp.float32)
    x = x_raw.reshape(B, -1)  # nn.Flatten()

    out = mlp_forward(x, params)
    out = jax.block_until_ready(out)
    ref = reference_forward(x, params)
    assert out.shape == (B, 1), out.shape
    # bf16 matmuls/activations + approx reciprocal vs. f32 reference -> modest tolerance.
    assert jnp.allclose(out, ref, atol=5e-3, rtol=5e-3), (out, ref)

    # Second run with an awkward batch size: exercises the multi-step grid
    # (megacore path), the pad-minimizing tile selection, and padded-row slicing.
    B2 = 1032
    x2 = jax.random.normal(xkey2, (B2, 16), dtype=jnp.float32)
    out2 = jax.block_until_ready(mlp_forward(x2, params))
    ref2 = reference_forward(x2, params)
    assert out2.shape == (B2, 1), out2.shape
    assert jnp.allclose(out2, ref2, atol=5e-3, rtol=5e-3)

    print("KERNEL_OK")
</pallas_src>

<mosaic_0001>
module attributes {stable_mosaic.version = 11 : i64} {
  func.func @_mlp_kernel(%arg0: i32, %arg1: memref<8x16xbf16, #tpu.memory_space<vmem>>, %arg2: memref<16x128xbf16, #tpu.memory_space<vmem>>, %arg3: memref<1x128xf32, #tpu.memory_space<vmem>>, %arg4: memref<128x128xbf16, #tpu.memory_space<vmem>>, %arg5: memref<1x128xf32, #tpu.memory_space<vmem>>, %arg6: memref<128x256xbf16, #tpu.memory_space<vmem>>, %arg7: memref<1x256xf32, #tpu.memory_space<vmem>>, %arg8: memref<256x256xbf16, #tpu.memory_space<vmem>>, %arg9: memref<1x256xf32, #tpu.memory_space<vmem>>, %arg10: memref<256x128xbf16, #tpu.memory_space<vmem>>, %arg11: memref<1x128xf32, #tpu.memory_space<vmem>>, %arg12: memref<128x128xbf16, #tpu.memory_space<vmem>>, %arg13: memref<1x128xf32, #tpu.memory_space<vmem>>, %arg14: memref<1x128xf32, #tpu.memory_space<vmem>>, %arg15: memref<1x1xf32, #tpu.memory_space<vmem>>, %arg16: memref<8x1xf32, #tpu.memory_space<vmem>>) attributes {dimension_semantics = [#tpu.dimension_semantics<parallel>], iteration_bounds = array<i64: 1>, scalar_prefetch = 0 : i64, scratch_operands = 0 : i64, tpu.core_type = #tpu.core_type<tc>, window_params = [{transform_indices = @transform_0, window_bounds = array<i64: 8, 16>}, {pipeline_mode = #tpu.pipeline_mode<synchronous>, transform_indices = @transform_1, window_bounds = array<i64: 16, 128>}, {pipeline_mode = #tpu.pipeline_mode<synchronous>, transform_indices = @transform_2, window_bounds = array<i64: 1, 128>}, {pipeline_mode = #tpu.pipeline_mode<synchronous>, transform_indices = @transform_3, window_bounds = array<i64: 128, 128>}, {pipeline_mode = #tpu.pipeline_mode<synchronous>, transform_indices = @transform_4, window_bounds = array<i64: 1, 128>}, {pipeline_mode = #tpu.pipeline_mode<synchronous>, transform_indices = @transform_5, window_bounds = array<i64: 128, 256>}, {pipeline_mode = #tpu.pipeline_mode<synchronous>, transform_indices = @transform_6, window_bounds = array<i64: 1, 256>}, {pipeline_mode = #tpu.pipeline_mode<synchronous>, transform_indices = @transform_7, window_bounds = array<i64: 256, 256>}, {pipeline_mode = #tpu.pipeline_mode<synchronous>, transform_indices = @transform_8, window_bounds = array<i64: 1, 256>}, {pipeline_mode = #tpu.pipeline_mode<synchronous>, transform_indices = @transform_9, window_bounds = array<i64: 256, 128>}, {pipeline_mode = #tpu.pipeline_mode<synchronous>, transform_indices = @transform_10, window_bounds = array<i64: 1, 128>}, {pipeline_mode = #tpu.pipeline_mode<synchronous>, transform_indices = @transform_11, window_bounds = array<i64: 128, 128>}, {pipeline_mode = #tpu.pipeline_mode<synchronous>, transform_indices = @transform_12, window_bounds = array<i64: 1, 128>}, {pipeline_mode = #tpu.pipeline_mode<synchronous>, transform_indices = @transform_13, window_bounds = array<i64: 1, 128>}, {pipeline_mode = #tpu.pipeline_mode<synchronous>, transform_indices = @transform_14, window_bounds = array<i64: 1, 1>}, {transform_indices = @transform_15, window_bounds = array<i64: 8, 1>}]} {
    %c0 = arith.constant 0 : index
    %c0_0 = arith.constant 0 : index
    %0 = vector.load %arg1[%c0, %c0_0] : memref<8x16xbf16, #tpu.memory_space<vmem>>, vector<8x16xbf16>
    %c0_1 = arith.constant 0 : index
    %c0_2 = arith.constant 0 : index
    %1 = vector.load %arg2[%c0_1, %c0_2] : memref<16x128xbf16, #tpu.memory_space<vmem>>, vector<16x128xbf16>
    %cst = arith.constant dense<0.000000e+00> : vector<8x128xf32>
    %2 = tpu.matmul %0, %1, %cst {dimension_numbers = #tpu.dot_dimension_numbers<[1], [0], [0], [1], [0, 0, 1, 1], [], []>} : vector<8x16xbf16>, vector<16x128xbf16>, vector<8x128xf32> -> vector<8x128xf32>
    %c0_3 = arith.constant 0 : index
    %c0_4 = arith.constant 0 : index
    %3 = vector.load %arg3[%c0_3, %c0_4] : memref<1x128xf32, #tpu.memory_space<vmem>>, vector<1x128xf32>
    %4 = vector.broadcast %3 : vector<1x128xf32> to vector<8x128xf32>
    %5 = arith.addf %2, %4 : vector<8x128xf32>
    %cst_5 = arith.constant 0.000000e+00 : f32
    %6 = vector.broadcast %cst_5 : f32 to vector<8x128xf32>
    %7 = arith.maximumf %5, %6 : vector<8x128xf32>
    %8 = arith.truncf %7 : vector<8x128xf32> to vector<8x128xbf16>
    %c0_6 = arith.constant 0 : index
    %c0_7 = arith.constant 0 : index
    %9 = vector.load %arg4[%c0_6, %c0_7] : memref<128x128xbf16, #tpu.memory_space<vmem>>, vector<128x128xbf16>
    %cst_8 = arith.constant dense<0.000000e+00> : vector<8x128xf32>
    %10 = tpu.matmul %8, %9, %cst_8 {dimension_numbers = #tpu.dot_dimension_numbers<[1], [0], [0], [1], [0, 0, 1, 1], [], []>} : vector<8x128xbf16>, vector<128x128xbf16>, vector<8x128xf32> -> vector<8x128xf32>
    %c0_9 = arith.constant 0 : index
    %c0_10 = arith.constant 0 : index
    %11 = vector.load %arg5[%c0_9, %c0_10] : memref<1x128xf32, #tpu.memory_space<vmem>>, vector<1x128xf32>
    %12 = vector.broadcast %11 : vector<1x128xf32> to vector<8x128xf32>
    %13 = arith.addf %10, %12 : vector<8x128xf32>
    %cst_11 = arith.constant 0.000000e+00 : f32
    %14 = vector.broadcast %cst_11 : f32 to vector<8x128xf32>
    %15 = arith.maximumf %13, %14 : vector<8x128xf32>
    %16 = arith.truncf %15 : vector<8x128xf32> to vector<8x128xbf16>
    %c0_12 = arith.constant 0 : index
    %c0_13 = arith.constant 0 : index
    %17 = vector.load %arg6[%c0_12, %c0_13] : memref<128x256xbf16, #tpu.memory_space<vmem>>, vector<128x256xbf16>
    %cst_14 = arith.constant dense<0.000000e+00> : vector<8x256xf32>
    %18 = tpu.matmul %16, %17, %cst_14 {dimension_numbers = #tpu.dot_dimension_numbers<[1], [0], [0], [1], [0, 0, 1, 1], [], []>} : vector<8x128xbf16>, vector<128x256xbf16>, vector<8x256xf32> -> vector<8x256xf32>
    %c0_15 = arith.constant 0 : index
    %c0_16 = arith.constant 0 : index
    %19 = vector.load %arg7[%c0_15, %c0_16] : memref<1x256xf32, #tpu.memory_space<vmem>>, vector<1x256xf32>
    %20 = vector.broadcast %19 : vector<1x256xf32> to vector<8x256xf32>
    %21 = arith.addf %18, %20 : vector<8x256xf32>
    %cst_17 = arith.constant 0.000000e+00 : f32
    %22 = vector.broadcast %cst_17 : f32 to vector<8x256xf32>
    %23 = arith.maximumf %21, %22 : vector<8x256xf32>
    %24 = arith.truncf %23 : vector<8x256xf32> to vector<8x256xbf16>
    %c0_18 = arith.constant 0 : index
    %c0_19 = arith.constant 0 : index
    %25 = vector.load %arg8[%c0_18, %c0_19] : memref<256x256xbf16, #tpu.memory_space<vmem>>, vector<256x256xbf16>
    %cst_20 = arith.constant dense<0.000000e+00> : vector<8x256xf32>
    %26 = tpu.matmul %24, %25, %cst_20 {dimension_numbers = #tpu.dot_dimension_numbers<[1], [0], [0], [1], [0, 0, 1, 1], [], []>} : vector<8x256xbf16>, vector<256x256xbf16>, vector<8x256xf32> -> vector<8x256xf32>
    %c0_21 = arith.constant 0 : index
    %c0_22 = arith.constant 0 : index
    %27 = vector.load %arg9[%c0_21, %c0_22] : memref<1x256xf32, #tpu.memory_space<vmem>>, vector<1x256xf32>
    %28 = vector.broadcast %27 : vector<1x256xf32> to vector<8x256xf32>
    %29 = arith.addf %26, %28 : vector<8x256xf32>
    %cst_23 = arith.constant 0.000000e+00 : f32
    %30 = vector.broadcast %cst_23 : f32 to vector<8x256xf32>
    %31 = arith.maximumf %29, %30 : vector<8x256xf32>
    %32 = arith.truncf %31 : vector<8x256xf32> to vector<8x256xbf16>
    %c0_24 = arith.constant 0 : index
    %c0_25 = arith.constant 0 : index
    %33 = vector.load %arg10[%c0_24, %c0_25] : memref<256x128xbf16, #tpu.memory_space<vmem>>, vector<256x128xbf16>
    %cst_26 = arith.constant dense<0.000000e+00> : vector<8x128xf32>
    %34 = tpu.matmul %32, %33, %cst_26 {dimension_numbers = #tpu.dot_dimension_numbers<[1], [0], [0], [1], [0, 0, 1, 1], [], []>} : vector<8x256xbf16>, vector<256x128xbf16>, vector<8x128xf32> -> vector<8x128xf32>
    %c0_27 = arith.constant 0 : index
    %c0_28 = arith.constant 0 : index
    %35 = vector.load %arg11[%c0_27, %c0_28] : memref<1x128xf32, #tpu.memory_space<vmem>>, vector<1x128xf32>
    %36 = vector.broadcast %35 : vector<1x128xf32> to vector<8x128xf32>
    %37 = arith.addf %34, %36 : vector<8x128xf32>
    %cst_29 = arith.constant 0.000000e+00 : f32
    %38 = vector.broadcast %cst_29 : f32 to vector<8x128xf32>
    %39 = arith.maximumf %37, %38 : vector<8x128xf32>
    %40 = arith.truncf %39 : vector<8x128xf32> to vector<8x128xbf16>
    %c0_30 = arith.constant 0 : index
    %c0_31 = arith.constant 0 : index
    %41 = vector.load %arg12[%c0_30, %c0_31] : memref<128x128xbf16, #tpu.memory_space<vmem>>, vector<128x128xbf16>
    %cst_32 = arith.constant dense<0.000000e+00> : vector<8x128xf32>
    %42 = tpu.matmul %40, %41, %cst_32 {dimension_numbers = #tpu.dot_dimension_numbers<[1], [0], [0], [1], [0, 0, 1, 1], [], []>} : vector<8x128xbf16>, vector<128x128xbf16>, vector<8x128xf32> -> vector<8x128xf32>
    %c0_33 = arith.constant 0 : index
    %c0_34 = arith.constant 0 : index
    %43 = vector.load %arg13[%c0_33, %c0_34] : memref<1x128xf32, #tpu.memory_space<vmem>>, vector<1x128xf32>
    %44 = vector.broadcast %43 : vector<1x128xf32> to vector<8x128xf32>
    %45 = arith.addf %42, %44 : vector<8x128xf32>
    %cst_35 = arith.constant 0.000000e+00 : f32
    %46 = vector.broadcast %cst_35 : f32 to vector<8x128xf32>
    %47 = arith.maximumf %45, %46 : vector<8x128xf32>
    %c0_36 = arith.constant 0 : index
    %c0_37 = arith.constant 0 : index
    %48 = vector.load %arg14[%c0_36, %c0_37] : memref<1x128xf32, #tpu.memory_space<vmem>>, vector<1x128xf32>
    %49 = vector.broadcast %48 : vector<1x128xf32> to vector<8x128xf32>
    %50 = arith.mulf %47, %49 : vector<8x128xf32>
    %cst_38 = arith.constant dense<0.000000e+00> : vector<8xf32>
    %51 = vector.multi_reduction <add>, %50, %cst_38 [1] : vector<8x128xf32> to vector<8xf32>
    %52 = vector.shape_cast %51 : vector<8xf32> to vector<8x1xf32>
    %c0_39 = arith.constant 0 : index
    %c0_40 = arith.constant 0 : index
    %53 = vector.load %arg15[%c0_39, %c0_40] : memref<1x1xf32, #tpu.memory_space<vmem>>, vector<1x1xf32>
    %54 = vector.broadcast %53 : vector<1x1xf32> to vector<8x1xf32>
    %55 = arith.addf %52, %54 : vector<8x1xf32>
    %56 = math.absf %55 : vector<8x1xf32>
    %cst_41 = arith.constant 0.000000e+00 : f32
    %57 = vector.broadcast %cst_41 : f32 to vector<8x1xf32>
    %58 = arith.subf %57, %56 : vector<8x1xf32>
    %59 = math.exp %58 : vector<8x1xf32>
    %cst_42 = arith.constant 1.000000e+00 : f32
    %60 = vector.broadcast %cst_42 : f32 to vector<8x1xf32>
    %61 = arith.addf %60, %59 : vector<8x1xf32>
    %62 = tpu.reciprocal %61 {approx = true} : vector<8x1xf32> -> vector<8x1xf32>
    %cst_43 = arith.constant 0.000000e+00 : f32
    %63 = vector.broadcast %cst_43 : f32 to vector<8x1xf32>
    %64 = arith.cmpf oge, %55, %63 : vector<8x1xf32>
    %65 = arith.mulf %59, %62 : vector<8x1xf32>
    %66 = arith.select %64, %62, %65 : vector<8x1xi1>, vector<8x1xf32>
    %c0_44 = arith.constant 0 : index
    %c0_45 = arith.constant 0 : index
    %67 = vector.load %arg16[%c0_44, %c0_45] : memref<8x1xf32, #tpu.memory_space<vmem>>, vector<8x1xf32>
    tpu.vector_store %arg16[%c0_44, %c0_45], %66 {strides = array<i32>} : memref<8x1xf32, #tpu.memory_space<vmem>>, vector<8x1xf32>,
    return
  }
  func.func @transform_0(%arg0: i32) -> (i32, i32) {
    %c0_i32 = arith.constant 0 : i32
    %c0_i32_0 = arith.constant 0 : i32
    return %arg0, %c0_i32 : i32, i32
  }
  func.func @transform_1(%arg0: i32) -> (i32, i32) {
    %c0_i32 = arith.constant 0 : i32
    %c0_i32_0 = arith.constant 0 : i32
    %c0_i32_1 = arith.constant 0 : i32
    return %c0_i32, %c0_i32_0 : i32, i32
  }
  func.func @transform_2(%arg0: i32) -> (i32, i32) {
    %c0_i32 = arith.constant 0 : i32
    %c0_i32_0 = arith.constant 0 : i32
    %c0_i32_1 = arith.constant 0 : i32
    return %c0_i32, %c0_i32_0 : i32, i32
  }
  func.func @transform_3(%arg0: i32) -> (i32, i32) {
    %c0_i32 = arith.constant 0 : i32
    %c0_i32_0 = arith.constant 0 : i32
    %c0_i32_1 = arith.constant 0 : i32
    return %c0_i32, %c0_i32_0 : i32, i32
  }
  func.func @transform_4(%arg0: i32) -> (i32, i32) {
    %c0_i32 = arith.constant 0 : i32
    %c0_i32_0 = arith.constant 0 : i32
    %c0_i32_1 = arith.constant 0 : i32
    return %c0_i32, %c0_i32_0 : i32, i32
  }
  func.func @transform_5(%arg0: i32) -> (i32, i32) {
    %c0_i32 = arith.constant 0 : i32
    %c0_i32_0 = arith.constant 0 : i32
    %c0_i32_1 = arith.constant 0 : i32
    return %c0_i32, %c0_i32_0 : i32, i32
  }
  func.func @transform_6(%arg0: i32) -> (i32, i32) {
    %c0_i32 = arith.constant 0 : i32
    %c0_i32_0 = arith.constant 0 : i32
    %c0_i32_1 = arith.constant 0 : i32
    return %c0_i32, %c0_i32_0 : i32, i32
  }
  func.func @transform_7(%arg0: i32) -> (i32, i32) {
    %c0_i32 = arith.constant 0 : i32
    %c0_i32_0 = arith.constant 0 : i32
    %c0_i32_1 = arith.constant 0 : i32
    return %c0_i32, %c0_i32_0 : i32, i32
  }
  func.func @transform_8(%arg0: i32) -> (i32, i32) {
    %c0_i32 = arith.constant 0 : i32
    %c0_i32_0 = arith.constant 0 : i32
    %c0_i32_1 = arith.constant 0 : i32
    return %c0_i32, %c0_i32_0 : i32, i32
  }
  func.func @transform_9(%arg0: i32) -> (i32, i32) {
    %c0_i32 = arith.constant 0 : i32
    %c0_i32_0 = arith.constant 0 : i32
    %c0_i32_1 = arith.constant 0 : i32
    return %c0_i32, %c0_i32_0 : i32, i32
  }
  func.func @transform_10(%arg0: i32) -> (i32, i32) {
    %c0_i32 = arith.constant 0 : i32
    %c0_i32_0 = arith.constant 0 : i32
    %c0_i32_1 = arith.constant 0 : i32
    return %c0_i32, %c0_i32_0 : i32, i32
  }
  func.func @transform_11(%arg0: i32) -> (i32, i32) {
    %c0_i32 = arith.constant 0 : i32
    %c0_i32_0 = arith.constant 0 : i32
    %c0_i32_1 = arith.constant 0 : i32
    return %c0_i32, %c0_i32_0 : i32, i32
  }
  func.func @transform_12(%arg0: i32) -> (i32, i32) {
    %c0_i32 = arith.constant 0 : i32
    %c0_i32_0 = arith.constant 0 : i32
    %c0_i32_1 = arith.constant 0 : i32
    return %c0_i32, %c0_i32_0 : i32, i32
  }
  func.func @transform_13(%arg0: i32) -> (i32, i32) {
    %c0_i32 = arith.constant 0 : i32
    %c0_i32_0 = arith.constant 0 : i32
    %c0_i32_1 = arith.constant 0 : i32
    return %c0_i32, %c0_i32_0 : i32, i32
  }
  func.func @transform_14(%arg0: i32) -> (i32, i32) {
    %c0_i32 = arith.constant 0 : i32
    %c0_i32_0 = arith.constant 0 : i32
    %c0_i32_1 = arith.constant 0 : i32
    return %c0_i32, %c0_i32_0 : i32, i32
  }
  func.func @transform_15(%arg0: i32) -> (i32, i32) {
    %c0_i32 = arith.constant 0 : i32
    %c0_i32_0 = arith.constant 0 : i32
    return %arg0, %c0_i32 : i32, i32
  }
}

</mosaic_0001>

<llo_original>
// kernel: tpu_custom_call.1
$region0: #{tpu_custom_call.1}
  #allocation0 [shape = 'u32[]', space=smem, size = 0x4, offset = 0x4, fixed_abs, tag = 'smem constant byte address 0x4 - core index']
  #allocation1 [shape = 'u32[72,128]{1,0:T(1,128)}', space=vmem, size = 0x9000, scoped, tag = 'internal scratch']
  #allocation2 [shape = 'f32[1,1]{1,0:T(1,128)S(1)}', space=vmem, size = 0x200, scoped, tag = 'scoped memory for tpu_custom_call.1']
  %s0 = inlined_call_operand.hbm [shape: bf16[8,16], index: 0, kind: input, shape index: {}]
  %s1 = inlined_call_operand.hbm [shape: bf16[16,128], index: 1, kind: input, shape index: {}]
  %s2 = inlined_call_operand.hbm [shape: f32[1,128], index: 2, kind: input, shape index: {}]
  %s3 = inlined_call_operand.hbm [shape: bf16[128,128], index: 3, kind: input, shape index: {}]
  %s4 = inlined_call_operand.vmem [shape: f32[1,128], index: 4, kind: input, shape index: {}]
  %s5 = inlined_call_operand.hbm [shape: bf16[128,256], index: 5, kind: input, shape index: {}]
  %s6 = inlined_call_operand.vmem [shape: f32[1,256], index: 6, kind: input, shape index: {}]
  %s7 = inlined_call_operand.hbm [shape: bf16[256,256], index: 7, kind: input, shape index: {}]
  %s8 = inlined_call_operand.vmem [shape: f32[1,256], index: 8, kind: input, shape index: {}]
  %s9 = inlined_call_operand.hbm [shape: bf16[256,128], index: 9, kind: input, shape index: {}]
  %s10 = inlined_call_operand.vmem [shape: f32[1,128], index: 10, kind: input, shape index: {}]
  %s11 = inlined_call_operand.hbm [shape: bf16[128,128], index: 11, kind: input, shape index: {}]
  %s12 = inlined_call_operand.vmem [shape: f32[1,128], index: 12, kind: input, shape index: {}]
  %s13 = inlined_call_operand.vmem [shape: f32[1,128], index: 13, kind: input, shape index: {}]
  %s14 = inlined_call_operand.<no memory space> [shape: f32[1,1], index: 14, kind: input, shape index: {}]
  %s15 = inlined_call_operand.vmem [shape: f32[8,1], index: 15, kind: output, shape index: {}]
  %s16 = sld [smem:[#allocation0]]
  $region102: #{tpu_custom_call.1} parent=0
    _
  %s18 = ssub.s32 1, %s16
  %s19 = scalar_select 0, %s18, %s16
  %v20 = vstv %s14
  %21 = vst [vmem:[#allocation2] sm:$0x1] %v20
  $region1: #{tpu_custom_call.1} parent=0
    #allocation3 [shape = 'u8[2048]{0}', space=vmem, size = 0x800, scoped, tag = 'input window, operand 0, single buffered']
    #allocation4 [shape = 's32[1]{0}', space=sflag, size = 0x4, scoped, tag = 'scoped memory for tpu_custom_call.1']
    #allocation5 [shape = 'u8[4096]{0}', space=vmem, size = 0x1000, scoped, tag = 'input window, operand 1, single buffered']
    #allocation6 [shape = 's32[1]{0}', space=sflag, size = 0x4, scoped, tag = 'scoped memory for tpu_custom_call.1']
    #allocation7 [shape = 'u8[512]{0}', space=vmem, size = 0x400, scoped, tag = 'input window, operand 2, single buffered']
    #allocation8 [shape = 'u8[32768]{0}', space=vmem, size = 0x8000, scoped, tag = 'input window, operand 3, single buffered']
    #allocation9 [shape = 's32[1]{0}', space=sflag, size = 0x4, scoped, tag = 'scoped memory for tpu_custom_call.1']
    #allocation10 [shape = 'u8[65536]{0}', space=vmem, size = 0x10000, scoped, tag = 'input window, operand 5, single buffered']
    #allocation11 [shape = 'u8[131072]{0}', space=vmem, size = 0x20000, scoped, tag = 'input window, operand 7, single buffered']
    #allocation12 [shape = 's32[1]{0}', space=sflag, size = 0x4, scoped, tag = 'scoped memory for tpu_custom_call.1']
    #allocation13 [shape = 'u8[65536]{0}', space=vmem, size = 0x10000, scoped, tag = 'input window, operand 9, single buffered']
    #allocation14 [shape = 'u8[32768]{0}', space=vmem, size = 0x8000, scoped, tag = 'input window, operand 11, single buffered']
    #allocation15 [shape = 's32[1]{0}', space=sflag, size = 0x4, scoped, tag = 'scoped memory for tpu_custom_call.1']
    %22 = vsyncpa [#allocation4], 0
    %23 = vsyncpa [#allocation6], 0
    %24 = vsyncpa [#allocation9], 0
    %25 = vsyncpa [#allocation12], 0
    %26 = vsyncpa [#allocation15], 0
    // Predicated region
    $region2: #{tpu_custom_call.1} parent=1 // pred_check
      _
    $region3: #{tpu_custom_call.1} parent=1 // pred_check_branch
      %28 = sbr.rel (0) target = $region5
    $region4: #{tpu_custom_call.1} parent=1 // pred_region
      %30 = vsyncadd [#allocation4], 0
      %s32 = sshll.u32 %s0, 4
      %s33 = int_to_ptr.hbm [resolvable:$true] %s32
      %s34 = sshll.u32 [#allocation3], 4
      %s35 = int_to_ptr.vmem [resolvable:$true] %s34
      %37 = dma.hbm_to_vmem [thread:$0]  %s33, 64, %s35, [#allocation4]
    $region5: #{tpu_custom_call.1} parent=1 // pred_fallthru
      _
    // Predicated region
    $region6: #{tpu_custom_call.1} parent=1 // pred_check
      _
    $region7: #{tpu_custom_call.1} parent=1 // pred_check_branch
      %39 = sbr.rel (0) target = $region9
    $region8: #{tpu_custom_call.1} parent=1 // pred_region
      %41 = vsyncadd [#allocation6], 0
      %s42 = sshll.u32 %s1, 4
      %s43 = int_to_ptr.hbm [resolvable:$true] %s42
      %s44 = sshll.u32 [#allocation5], 4
      %s45 = int_to_ptr.vmem [resolvable:$true] %s44
      %50 = dma.hbm_to_vmem [thread:$0]  %s43, 128, %s45, [#allocation6], 64, 64, 4
    $region9: #{tpu_custom_call.1} parent=1 // pred_fallthru
      _
    // Predicated region
    $region10: #{tpu_custom_call.1} parent=1 // pred_check
      _
    $region11: #{tpu_custom_call.1} parent=1 // pred_check_branch
      %52 = sbr.rel (0) target = $region13
    $region12: #{tpu_custom_call.1} parent=1 // pred_region
      %54 = vsyncadd [#allocation6], 0
      %s56 = sshll.u32 %s2, 4
      %s57 = int_to_ptr.hbm [resolvable:$true] %s56
      %s58 = sshll.u32 [#allocation7], 4
      %s59 = int_to_ptr.vmem [resolvable:$true] %s58
      %61 = dma.hbm_to_vmem [thread:$0]  %s57, 16, %s59, [#allocation6]
    $region13: #{tpu_custom_call.1} parent=1 // pred_fallthru
      _
    // Predicated region
    $region14: #{tpu_custom_call.1} parent=1 // pred_check
      _
    $region15: #{tpu_custom_call.1} parent=1 // pred_check_branch
      %63 = sbr.rel (0) target = $region17
    $region16: #{tpu_custom_call.1} parent=1 // pred_region
      %65 = vsyncadd [#allocation9], 0
      %s66 = sshll.u32 %s3, 4
      %s67 = int_to_ptr.hbm [resolvable:$true] %s66
      %s68 = sshll.u32 [#allocation8], 4
      %s69 = int_to_ptr.vmem [resolvable:$true] %s68
      %74 = dma.hbm_to_vmem [thread:$0]  %s67, 1024, %s69, [#allocation9], 64, 64, 4
    $region17: #{tpu_custom_call.1} parent=1 // pred_fallthru
      _
    // Predicated region
    $region18: #{tpu_custom_call.1} parent=1 // pred_check
      _
    $region19: #{tpu_custom_call.1} parent=1 // pred_check_branch
      %76 = sbr.rel (0) target = $region21
    $region20: #{tpu_custom_call.1} parent=1 // pred_region
      _
    $region21: #{tpu_custom_call.1} parent=1 // pred_fallthru
      _
    // Predicated region
    $region22: #{tpu_custom_call.1} parent=1 // pred_check
      _
    $region23: #{tpu_custom_call.1} parent=1 // pred_check_branch
      %78 = sbr.rel (0) target = $region25
    $region24: #{tpu_custom_call.1} parent=1 // pred_region
      %80 = vsyncadd [#allocation9], 0
      %s81 = sshll.u32 %s5, 4
      %s82 = int_to_ptr.hbm [resolvable:$true] %s81
      %s83 = sshll.u32 [#allocation10], 4
      %s84 = int_to_ptr.vmem [resolvable:$true] %s83
      %89 = dma.hbm_to_vmem [thread:$0]  %s82, 2048, %s84, [#allocation9], 128, 128, 8
    $region25: #{tpu_custom_call.1} parent=1 // pred_fallthru
      _
    // Predicated region
    $region26: #{tpu_custom_call.1} parent=1 // pred_check
      _
    $region27: #{tpu_custom_call.1} parent=1 // pred_check_branch
      %91 = sbr.rel (0) target = $region29
    $region28: #{tpu_custom_call.1} parent=1 // pred_region
      _
    $region29: #{tpu_custom_call.1} parent=1 // pred_fallthru
      _
    // Predicated region
    $region30: #{tpu_custom_call.1} parent=1 // pred_check
      _
    $region31: #{tpu_custom_call.1} parent=1 // pred_check_branch
      %93 = sbr.rel (0) target = $region33
    $region32: #{tpu_custom_call.1} parent=1 // pred_region
      %95 = vsyncadd [#allocation12], 0
      %s96 = sshll.u32 %s7, 4
      %s97 = int_to_ptr.hbm [resolvable:$true] %s96
      %s98 = sshll.u32 [#allocation11], 4
      %s99 = int_to_ptr.vmem [resolvable:$true] %s98
      %104 = dma.hbm_to_vmem [thread:$0]  %s97, 4096, %s99, [#allocation12], 128, 128, 8
    $region33: #{tpu_custom_call.1} parent=1 // pred_fallthru
      _
    // Predicated region
    $region34: #{tpu_custom_call.1} parent=1 // pred_check
      _
    $region35: #{tpu_custom_call.1} parent=1 // pred_check_branch
      %106 = sbr.rel (0) target = $region37
    $region36: #{tpu_custom_call.1} parent=1 // pred_region
      _
    $region37: #{tpu_custom_call.1} parent=1 // pred_fallthru
      _
    // Predicated region
    $region38: #{tpu_custom_call.1} parent=1 // pred_check
      _
    $region39: #{tpu_custom_call.1} parent=1 // pred_check_branch
      %108 = sbr.rel (0) target = $region41
    $region40: #{tpu_custom_call.1} parent=1 // pred_region
      %110 = vsyncadd [#allocation12], 0
      %s111 = sshll.u32 %s9, 4
      %s112 = int_to_ptr.hbm [resolvable:$true] %s111
      %s113 = sshll.u32 [#allocation13], 4
      %s114 = int_to_ptr.vmem [resolvable:$true] %s113
      %119 = dma.hbm_to_vmem [thread:$0]  %s112, 2048, %s114, [#allocation12], 64, 64, 4
    $region41: #{tpu_custom_call.1} parent=1 // pred_fallthru
      _
    // Predicated region
    $region42: #{tpu_custom_call.1} parent=1 // pred_check
      _
    $region43: #{tpu_custom_call.1} parent=1 // pred_check_branch
      %121 = sbr.rel (0) target = $region45
    $region44: #{tpu_custom_call.1} parent=1 // pred_region
      _
    $region45: #{tpu_custom_call.1} parent=1 // pred_fallthru
      _
    // Predicated region
    $region46: #{tpu_custom_call.1} parent=1 // pred_check
      _
    $region47: #{tpu_custom_call.1} parent=1 // pred_check_branch
      %123 = sbr.rel (0) target = $region49
    $region48: #{tpu_custom_call.1} parent=1 // pred_region
      %125 = vsyncadd [#allocation15], 0
      %s126 = sshll.u32 %s11, 4
      %s127 = int_to_ptr.hbm [resolvable:$true] %s126
      %s128 = sshll.u32 [#allocation14], 4
      %s129 = int_to_ptr.vmem [resolvable:$true] %s128
      %134 = dma.hbm_to_vmem [thread:$0]  %s127, 1024, %s129, [#allocation15], 64, 64, 4
    $region49: #{tpu_custom_call.1} parent=1 // pred_fallthru
      _
    // Predicated region
    $region50: #{tpu_custom_call.1} parent=1 // pred_check
      _
    $region51: #{tpu_custom_call.1} parent=1 // pred_check_branch
      %136 = sbr.rel (0) target = $region53
    $region52: #{tpu_custom_call.1} parent=1 // pred_region
      _
    $region53: #{tpu_custom_call.1} parent=1 // pred_fallthru
      _
    // Predicated region
    $region54: #{tpu_custom_call.1} parent=1 // pred_check
      _
    $region55: #{tpu_custom_call.1} parent=1 // pred_check_branch
      %138 = sbr.rel (0) target = $region57
    $region56: #{tpu_custom_call.1} parent=1 // pred_region
      _
    $region57: #{tpu_custom_call.1} parent=1 // pred_fallthru
      _
    // Predicated region
    $region58: #{tpu_custom_call.1} parent=1 // pred_check
      _
    $region59: #{tpu_custom_call.1} parent=1 // pred_check_branch
      %140 = sbr.rel (0) target = $region61
    $region60: #{tpu_custom_call.1} parent=1 // pred_region
      _
    $region61: #{tpu_custom_call.1} parent=1 // pred_fallthru
      _
    // Predicated region
    $region62: #{tpu_custom_call.1} parent=1 // pred_check
      _
    $region63: #{tpu_custom_call.1} parent=1 // pred_check_branch
      %142 = sbr.rel (0) target = $region65
    $region64: #{tpu_custom_call.1} parent=1 // pred_region
      %144 = dma.done [#allocation4], 64
    $region65: #{tpu_custom_call.1} parent=1 // pred_fallthru
      _
    // Predicated region
    $region66: #{tpu_custom_call.1} parent=1 // pred_check
      _
    $region67: #{tpu_custom_call.1} parent=1 // pred_check_branch
      %146 = sbr.rel (0) target = $region69
    $region68: #{tpu_custom_call.1} parent=1 // pred_region
      %148 = dma.done [#allocation6], 128
    $region69: #{tpu_custom_call.1} parent=1 // pred_fallthru
      _
    // Predicated region
    $region70: #{tpu_custom_call.1} parent=1 // pred_check
      _
    $region71: #{tpu_custom_call.1} parent=1 // pred_check_branch
      %150 = sbr.rel (0) target = $region73
    $region72: #{tpu_custom_call.1} parent=1 // pred_region
      %152 = dma.done [#allocation6], 16
    $region73: #{tpu_custom_call.1} parent=1 // pred_fallthru
      _
    // Predicated region
    $region74: #{tpu_custom_call.1} parent=1 // pred_check
      _
    $region75: #{tpu_custom_call.1} parent=1 // pred_check_branch
      %154 = sbr.rel (0) target = $region77
    $region76: #{tpu_custom_call.1} parent=1 // pred_region
      %156 = dma.done [#allocation9], 1024
    $region77: #{tpu_custom_call.1} parent=1 // pred_fallthru
      _
    // Predicated region
    $region78: #{tpu_custom_call.1} parent=1 // pred_check
      _
    $region79: #{tpu_custom_call.1} parent=1 // pred_check_branch
      %158 = sbr.rel (0) target = $region81
    $region80: #{tpu_custom_call.1} parent=1 // pred_region
      %160 = dma.done [#allocation9], 2048
    $region81: #{tpu_custom_call.1} parent=1 // pred_fallthru
      _
    // Predicated region
    $region82: #{tpu_custom_call.1} parent=1 // pred_check
      _
    $region83: #{tpu_custom_call.1} parent=1 // pred_check_branch
      %162 = sbr.rel (0) target = $region85
    $region84: #{tpu_custom_call.1} parent=1 // pred_region
      %164 = dma.done [#allocation12], 4096
    $region85: #{tpu_custom_call.1} parent=1 // pred_fallthru
      _
    // Predicated region
    $region86: #{tpu_custom_call.1} parent=1 // pred_check
      _
    $region87: #{tpu_custom_call.1} parent=1 // pred_check_branch
      %166 = sbr.rel (0) target = $region89
    $region88: #{tpu_custom_call.1} parent=1 // pred_region
      %168 = dma.done [#allocation12], 2048
    $region89: #{tpu_custom_call.1} parent=1 // pred_fallthru
      _
    // Predicated region
    $region90: #{tpu_custom_call.1} parent=1 // pred_check
      _
    $region91: #{tpu_custom_call.1} parent=1 // pred_check_branch
      %170 = sbr.rel (0) target = $region93
    $region92: #{tpu_custom_call.1} parent=1 // pred_region
      %172 = dma.done [#allocation15], 1024
    $region93: #{tpu_custom_call.1} parent=1 // pred_fallthru
      _
    %v174 = vld [vmem:[#allocation3] sm:$0xf]
    %v175 = vld [vmem:[#allocation5] sm:$0xf]
    %v176 = vld [vmem:[#allocation5 + $0x4] sm:$0xf]
    %v177 = vld [vmem:[#allocation7] sm:$0x1]
    %v179 = vperm.slane %v177, 0
    %v183 = vunpack.c.l.b16 %v175
    %v184 = vunpack.c.l.b16 %v176
    %v185 = vpack.c.b16 %v184, %v183
    %vm187 = vcmask 130048
    %v189 = vsel %vm187, %v174, 0
    %191 = vmatpush.bf16.msra.mxu0 0
    %192 = vmatpush.bf16.msra.mxu0 0
    %193 = vmatpush.bf16.msra.mxu0 0
    %194 = vmatpush.bf16.msra.mxu0 0
    %195 = vmatpush.bf16.msra.mxu0 0
    %196 = vmatpush.bf16.msra.mxu0 0
    %197 = vmatpush.bf16.msra.mxu0 0
    %198 = vmatpush.bf16.msra.mxu0 %v185
    %199 = vmatmul.bf16.gmra.mxu0 %v189
    %v200 = vpop.f32.mrf.mxu0
    %v201 = vadd.f32 %v179, %v200
    %v202 = vpop.f32.mrf.mxu0
    %203 = vdwg.mxu0
    %v204 = vmax.f32 %v201, 0.0
    %v205 = vpack.c.bf16 %v204, %v204
    %v206 = vld [vmem:[#allocation8] sm:$0xf]
    %v207 = vld [vmem:[#allocation8 + $0x4] sm:$0xf]
    %v208 = vld [vmem:[#allocation8 + $0x8] sm:$0xf]
    %v209 = vld [vmem:[#allocation8 + $0xc] sm:$0xf]
    %v210 = vld [vmem:[#allocation8 + $0x10] sm:$0xf]
    %v211 = vld [vmem:[#allocation8 + $0x14] sm:$0xf]
    %v212 = vld [vmem:[#allocation8 + $0x18] sm:$0xf]
    %v213 = vld [vmem:[#allocation8 + $0x1c] sm:$0xf]
    %v214 = vld [vmem:[#allocation8 + $0x20] sm:$0xf]
    %v215 = vld [vmem:[#allocation8 + $0x24] sm:$0xf]
    %v216 = vld [vmem:[#allocation8 + $0x28] sm:$0xf]
    %v217 = vld [vmem:[#allocation8 + $0x2c] sm:$0xf]
    %v218 = vld [vmem:[#allocation8 + $0x30] sm:$0xf]
    %v219 = vld [vmem:[#allocation8 + $0x34] sm:$0xf]
    %v220 = vld [vmem:[#allocation8 + $0x38] sm:$0xf]
    %v221 = vld [vmem:[#allocation8 + $0x3c] sm:$0xf]
    %v222 = vld [vmem:[%s4] sm:$0x1]
    %v224 = vperm.slane %v222, 0
    %v242 = vunpack.c.l.b16 %v206
    %v243 = vunpack.c.l.b16 %v207
    %v244 = vunpack.c.l.b16 %v208
    %v245 = vunpack.c.l.b16 %v209
    %v246 = vunpack.c.l.b16 %v210
    %v247 = vunpack.c.l.b16 %v211
    %v248 = vunpack.c.l.b16 %v212
    %v249 = vunpack.c.l.b16 %v213
    %v250 = vunpack.c.l.b16 %v214
    %v251 = vunpack.c.l.b16 %v215
    %v252 = vunpack.c.l.b16 %v216
    %v253 = vunpack.c.l.b16 %v217
    %v254 = vunpack.c.l.b16 %v218
    %v255 = vunpack.c.l.b16 %v219
    %v256 = vunpack.c.l.b16 %v220
    %v257 = vunpack.c.l.b16 %v221
    %v258 = vpack.c.b16 %v243, %v242
    %v259 = vpack.c.b16 %v245, %v244
    %v260 = vpack.c.b16 %v247, %v246
    %v261 = vpack.c.b16 %v249, %v248
    %v262 = vpack.c.b16 %v251, %v250
    %v263 = vpack.c.b16 %v253, %v252
    %v264 = vpack.c.b16 %v255, %v254
    %v265 = vpack.c.b16 %v257, %v256
    %274 = vmatpush.bf16.msra.mxu0 %v265
    %275 = vmatpush.bf16.msra.mxu0 %v264
    %276 = vmatpush.bf16.msra.mxu0 %v263
    %277 = vmatpush.bf16.msra.mxu0 %v262
    %278 = vmatpush.bf16.msra.mxu0 %v261
    %279 = vmatpush.bf16.msra.mxu0 %v260
    %280 = vmatpush.bf16.msra.mxu0 %v259
    %281 = vmatpush.bf16.msra.mxu0 %v258
    %282 = vmatmul.bf16.gmra.mxu0 %v205
    %v283 = vpop.f32.mrf.mxu0
    %v284 = vadd.f32 %v224, %v283
    %v285 = vpop.f32.mrf.mxu0
    %286 = vdwg.mxu0
    %v287 = vmax.f32 %v284, 0.0
    %v288 = vpack.c.bf16 %v287, %v287
    %v289 = vld [vmem:[#allocation10] sm:$0xff]
    %v290 = vld [vmem:[#allocation10 + $0x8] sm:$0xff]
    %v291 = vld [vmem:[#allocation10 + $0x10] sm:$0xff]
    %v292 = vld [vmem:[#allocation10 + $0x18] sm:$0xff]
    %v293 = vld [vmem:[#allocation10 + $0x20] sm:$0xff]
    %v294 = vld [vmem:[#allocation10 + $0x28] sm:$0xff]
    %v295 = vld [vmem:[#allocation10 + $0x30] sm:$0xff]
    %v296 = vld [vmem:[#allocation10 + $0x38] sm:$0xff]
    %v297 = vld [vmem:[#allocation10 + $0x40] sm:$0xff]
    %v298 = vld [vmem:[#allocation10 + $0x48] sm:$0xff]
    %v299 = vld [vmem:[#allocation10 + $0x50] sm:$0xff]
    %v300 = vld [vmem:[#allocation10 + $0x58] sm:$0xff]
    %v301 = vld [vmem:[#allocation10 + $0x60] sm:$0xff]
    %v302 = vld [vmem:[#allocation10 + $0x68] sm:$0xff]
    %v303 = vld [vmem:[#allocation10 + $0x70] sm:$0xff]
    %v304 = vld [vmem:[#allocation10 + $0x78] sm:$0xff]
    %v305 = vld [vmem:[%s6] sm:$0x3]
    %v307 = vperm.slane %v305, 0
    %v308 = vperm.slane %v305, 1
    %v327 = vunpack.c.l.b16 %v289
    %v328 = vunpack.c.h.b16 %v289
    %v329 = vunpack.c.l.b16 %v290
    %v330 = vunpack.c.h.b16 %v290
    %v331 = vunpack.c.l.b16 %v291
    %v332 = vunpack.c.h.b16 %v291
    %v333 = vunpack.c.l.b16 %v292
    %v334 = vunpack.c.h.b16 %v292
    %v335 = vunpack.c.l.b16 %v293
    %v336 = vunpack.c.h.b16 %v293
    %v337 = vunpack.c.l.b16 %v294
    %v338 = vunpack.c.h.b16 %v294
    %v339 = vunpack.c.l.b16 %v295
    %v340 = vunpack.c.h.b16 %v295
    %v341 = vunpack.c.l.b16 %v296
    %v342 = vunpack.c.h.b16 %v296
    %v343 = vunpack.c.l.b16 %v297
    %v344 = vunpack.c.h.b16 %v297
    %v345 = vunpack.c.l.b16 %v298
    %v346 = vunpack.c.h.b16 %v298
    %v347 = vunpack.c.l.b16 %v299
    %v348 = vunpack.c.h.b16 %v299
    %v349 = vunpack.c.l.b16 %v300
    %v350 = vunpack.c.h.b16 %v300
    %v351 = vunpack.c.l.b16 %v301
    %v352 = vunpack.c.h.b16 %v301
    %v353 = vunpack.c.l.b16 %v302
    %v354 = vunpack.c.h.b16 %v302
    %v355 = vunpack.c.l.b16 %v303
    %v356 = vunpack.c.h.b16 %v303
    %v357 = vunpack.c.l.b16 %v304
    %v358 = vunpack.c.h.b16 %v304
    %v359 = vpack.c.b16 %v329, %v327
    %v360 = vpack.c.b16 %v330, %v328
    %v361 = vpack.c.b16 %v333, %v331
    %v362 = vpack.c.b16 %v334, %v332
    %v363 = vpack.c.b16 %v337, %v335
    %v364 = vpack.c.b16 %v338, %v336
    %v365 = vpack.c.b16 %v341, %v339
    %v366 = vpack.c.b16 %v342, %v340
    %v367 = vpack.c.b16 %v345, %v343
    %v368 = vpack.c.b16 %v346, %v344
    %v369 = vpack.c.b16 %v349, %v347
    %v370 = vpack.c.b16 %v350, %v348
    %v371 = vpack.c.b16 %v353, %v351
    %v372 = vpack.c.b16 %v354, %v352
    %v373 = vpack.c.b16 %v357, %v355
    %v374 = vpack.c.b16 %v358, %v356
    %391 = vmatpush.bf16.msra.mxu0 %v373
    %392 = vmatpush.bf16.msra.mxu0 %v371
    %393 = vmatpush.bf16.msra.mxu0 %v369
    %394 = vmatpush.bf16.msra.mxu0 %v367
    %395 = vmatpush.bf16.msra.mxu0 %v365
    %396 = vmatpush.bf16.msra.mxu0 %v363
    %397 = vmatpush.bf16.msra.mxu0 %v361
    %398 = vmatpush.bf16.msra.mxu0 %v359
    %399 = vmatmul.bf16.gmra.mxu0 %v288
    %v400 = vpop.f32.mrf.mxu0
    %v401 = vadd.f32 %v307, %v400
    %v402 = vpop.f32.mrf.mxu0
    %403 = vdwg.mxu0
    %404 = vmatpush.bf16.msra.mxu0 %v374
    %405 = vmatpush.bf16.msra.mxu0 %v372
    %406 = vmatpush.bf16.msra.mxu0 %v370
    %407 = vmatpush.bf16.msra.mxu0 %v368
    %408 = vmatpush.bf16.msra.mxu0 %v366
    %409 = vmatpush.bf16.msra.mxu0 %v364
    %410 = vmatpush.bf16.msra.mxu0 %v362
    %411 = vmatpush.bf16.msra.mxu0 %v360
    %412 = vmatmul.bf16.gmra.mxu0 %v288
    %v413 = vpop.f32.mrf.mxu0
    %v414 = vadd.f32 %v308, %v413
    %v415 = vpop.f32.mrf.mxu0
    %416 = vdwg.mxu0
    %v417 = vmax.f32 %v401, 0.0
    %v418 = vmax.f32 %v414, 0.0
    %v419 = vpack.c.bf16 %v417, %v417
    %v420 = vpack.c.bf16 %v418, %v418
    %v421 = vld [vmem:[#allocation11] sm:$0xff]
    %v422 = vld [vmem:[#allocation11 + $0x8] sm:$0xff]
    %v423 = vld [vmem:[#allocation11 + $0x10] sm:$0xff]
    %v424 = vld [vmem:[#allocation11 + $0x18] sm:$0xff]
    %v425 = vld [vmem:[#allocation11 + $0x20] sm:$0xff]
    %v426 = vld [vmem:[#allocation11 + $0x28] sm:$0xff]
    %v427 = vld [vmem:[#allocation11 + $0x30] sm:$0xff]
    %v428 = vld [vmem:[#allocation11 + $0x38] sm:$0xff]
    %v429 = vld [vmem:[#allocation11 + $0x40] sm:$0xff]
    %v430 = vld [vmem:[#allocation11 + $0x48] sm:$0xff]
    %v431 = vld [vmem:[#allocation11 + $0x50] sm:$0xff]
    %v432 = vld [vmem:[#allocation11 + $0x58] sm:$0xff]
    %v433 = vld [vmem:[#allocation11 + $0x60] sm:$0xff]
    %v434 = vld [vmem:[#allocation11 + $0x68] sm:$0xff]
    %v435 = vld [vmem:[#allocation11 + $0x70] sm:$0xff]
    %v436 = vld [vmem:[#allocation11 + $0x78] sm:$0xff]
    %v437 = vld [vmem:[#allocation11 + $0x80] sm:$0xff]
    %v438 = vld [vmem:[#allocation11 + $0x88] sm:$0xff]
    %v439 = vld [vmem:[#allocation11 + $0x90] sm:$0xff]
    %v440 = vld [vmem:[#allocation11 + $0x98] sm:$0xff]
    %v441 = vld [vmem:[#allocation11 + $0xa0] sm:$0xff]
    %v442 = vld [vmem:[#allocation11 + $0xa8] sm:$0xff]
    %v443 = vld [vmem:[#allocation11 + $0xb0] sm:$0xff]
    %v444 = vld [vmem:[#allocation11 + $0xb8] sm:$0xff]
    %v445 = vld [vmem:[#allocation11 + $0xc0] sm:$0xff]
    %v446 = vld [vmem:[#allocation11 + $0xc8] sm:$0xff]
    %v447 = vld [vmem:[#allocation11 + $0xd0] sm:$0xff]
    %v448 = vld [vmem:[#allocation11 + $0xd8] sm:$0xff]
    %v449 = vld [vmem:[#allocation11 + $0xe0] sm:$0xff]
    %v450 = vld [vmem:[#allocation11 + $0xe8] sm:$0xff]
    %v451 = vld [vmem:[#allocation11 + $0xf0] sm:$0xff]
    %v452 = vld [vmem:[#allocation11 + $0xf8] sm:$0xff]
    %v453 = vld [vmem:[%s8] sm:$0x3]
    %v455 = vperm.slane %v453, 0
    %v456 = vperm.slane %v453, 1
    %v491 = vunpack.c.l.b16 %v421
    %v492 = vunpack.c.h.b16 %v421
    %v493 = vunpack.c.l.b16 %v422
    %v494 = vunpack.c.h.b16 %v422
    %v495 = vunpack.c.l.b16 %v423
    %v496 = vunpack.c.h.b16 %v423
    %v497 = vunpack.c.l.b16 %v424
    %v498 = vunpack.c.h.b16 %v424
    %v499 = vunpack.c.l.b16 %v425
    %v500 = vunpack.c.h.b16 %v425
    %v501 = vunpack.c.l.b16 %v426
    %v502 = vunpack.c.h.b16 %v426
    %v503 = vunpack.c.l.b16 %v427
    %v504 = vunpack.c.h.b16 %v427
    %v505 = vunpack.c.l.b16 %v428
    %v506 = vunpack.c.h.b16 %v428
    %v507 = vunpack.c.l.b16 %v429
    %v508 = vunpack.c.h.b16 %v429
    %v509 = vunpack.c.l.b16 %v430
    %v510 = vunpack.c.h.b16 %v430
    %v511 = vunpack.c.l.b16 %v431
    %v512 = vunpack.c.h.b16 %v431
    %v513 = vunpack.c.l.b16 %v432
    %v514 = vunpack.c.h.b16 %v432
    %v515 = vunpack.c.l.b16 %v433
    %v516 = vunpack.c.h.b16 %v433
    %v517 = vunpack.c.l.b16 %v434
    %v518 = vunpack.c.h.b16 %v434
    %v519 = vunpack.c.l.b16 %v435
    %v520 = vunpack.c.h.b16 %v435
    %v521 = vunpack.c.l.b16 %v436
    %v522 = vunpack.c.h.b16 %v436
    %v523 = vunpack.c.l.b16 %v437
    %v524 = vunpack.c.h.b16 %v437
    %v525 = vunpack.c.l.b16 %v438
    %v526 = vunpack.c.h.b16 %v438
    %v527 = vunpack.c.l.b16 %v439
    %v528 = vunpack.c.h.b16 %v439
    %v529 = vunpack.c.l.b16 %v440
    %v530 = vunpack.c.h.b16 %v440
    %v531 = vunpack.c.l.b16 %v441
    %v532 = vunpack.c.h.b16 %v441
    %v533 = vunpack.c.l.b16 %v442
    %v534 = vunpack.c.h.b16 %v442
    %v535 = vunpack.c.l.b16 %v443
    %v536 = vunpack.c.h.b16 %v443
    %v537 = vunpack.c.l.b16 %v444
    %v538 = vunpack.c.h.b16 %v444
    %v539 = vunpack.c.l.b16 %v445
    %v540 = vunpack.c.h.b16 %v445
    %v541 = vunpack.c.l.b16 %v446
    %v542 = vunpack.c.h.b16 %v446
    %v543 = vunpack.c.l.b16 %v447
    %v544 = vunpack.c.h.b16 %v447
    %v545 = vunpack.c.l.b16 %v448
    %v546 = vunpack.c.h.b16 %v448
    %v547 = vunpack.c.l.b16 %v449
    %v548 = vunpack.c.h.b16 %v449
    %v549 = vunpack.c.l.b16 %v450
    %v550 = vunpack.c.h.b16 %v450
    %v551 = vunpack.c.l.b16 %v451
    %v552 = vunpack.c.h.b16 %v451
    %v553 = vunpack.c.l.b16 %v452
    %v554 = vunpack.c.h.b16 %v452
    %v555 = vpack.c.b16 %v493, %v491
    %v556 = vpack.c.b16 %v494, %v492
    %v557 = vpack.c.b16 %v497, %v495
    %v558 = vpack.c.b16 %v498, %v496
    %v559 = vpack.c.b16 %v501, %v499
    %v560 = vpack.c.b16 %v502, %v500
    %v561 = vpack.c.b16 %v505, %v503
    %v562 = vpack.c.b16 %v506, %v504
    %v563 = vpack.c.b16 %v509, %v507
    %v564 = vpack.c.b16 %v510, %v508
    %v565 = vpack.c.b16 %v513, %v511
    %v566 = vpack.c.b16 %v514, %v512
    %v567 = vpack.c.b16 %v517, %v515
    %v568 = vpack.c.b16 %v518, %v516
    %v569 = vpack.c.b16 %v521, %v519
    %v570 = vpack.c.b16 %v522, %v520
    %v571 = vpack.c.b16 %v525, %v523
    %v572 = vpack.c.b16 %v526, %v524
    %v573 = vpack.c.b16 %v529, %v527
    %v574 = vpack.c.b16 %v530, %v528
    %v575 = vpack.c.b16 %v533, %v531
    %v576 = vpack.c.b16 %v534, %v532
    %v577 = vpack.c.b16 %v537, %v535
    %v578 = vpack.c.b16 %v538, %v536
    %v579 = vpack.c.b16 %v541, %v539
    %v580 = vpack.c.b16 %v542, %v540
    %v581 = vpack.c.b16 %v545, %v543
    %v582 = vpack.c.b16 %v546, %v544
    %v583 = vpack.c.b16 %v549, %v547
    %v584 = vpack.c.b16 %v550, %v548
    %v585 = vpack.c.b16 %v553, %v551
    %v586 = vpack.c.b16 %v554, %v552
    %619 = vmatpush.bf16.msra.mxu0 %v569
    %620 = vmatpush.bf16.msra.mxu0 %v567
    %621 = vmatpush.bf16.msra.mxu0 %v565
    %622 = vmatpush.bf16.msra.mxu0 %v563
    %623 = vmatpush.bf16.msra.mxu0 %v561
    %624 = vmatpush.bf16.msra.mxu0 %v559
    %625 = vmatpush.bf16.msra.mxu0 %v557
    %626 = vmatpush.bf16.msra.mxu0 %v555
    %627 = vmatmul.bf16.gmra.mxu0 %v419
    %v628 = vpop.f32.mrf.mxu0
    %v629 = vadd.f32 %v455, %v628
    %v630 = vpop.f32.mrf.mxu0
    %631 = vdwg.mxu0
    %632 = vmatpush.bf16.msra.mxu0 %v585
    %633 = vmatpush.bf16.msra.mxu0 %v583
    %634 = vmatpush.bf16.msra.mxu0 %v581
    %635 = vmatpush.bf16.msra.mxu0 %v579
    %636 = vmatpush.bf16.msra.mxu0 %v577
    %637 = vmatpush.bf16.msra.mxu0 %v575
    %638 = vmatpush.bf16.msra.mxu0 %v573
    %639 = vmatpush.bf16.msra.mxu0 %v571
    %640 = vmatmul.bf16.gmra.mxu0 %v420
    %v641 = vpop.f32.mrf.mxu0
    %v642 = vadd.f32 %v629, %v641
    %v643 = vpop.f32.mrf.mxu0
    %644 = vdwg.mxu0
    %645 = vmatpush.bf16.msra.mxu0 %v570
    %646 = vmatpush.bf16.msra.mxu0 %v568
    %647 = vmatpush.bf16.msra.mxu0 %v566
    %648 = vmatpush.bf16.msra.mxu0 %v564
    %649 = vmatpush.bf16.msra.mxu0 %v562
    %650 = vmatpush.bf16.msra.mxu0 %v560
    %651 = vmatpush.bf16.msra.mxu0 %v558
    %652 = vmatpush.bf16.msra.mxu0 %v556
    %653 = vmatmul.bf16.gmra.mxu0 %v419
    %v654 = vpop.f32.mrf.mxu0
    %v655 = vadd.f32 %v456, %v654
    %v656 = vpop.f32.mrf.mxu0
    %657 = vdwg.mxu0
    %658 = vmatpush.bf16.msra.mxu0 %v586
    %659 = vmatpush.bf16.msra.mxu0 %v584
    %660 = vmatpush.bf16.msra.mxu0 %v582
    %661 = vmatpush.bf16.msra.mxu0 %v580
    %662 = vmatpush.bf16.msra.mxu0 %v578
    %663 = vmatpush.bf16.msra.mxu0 %v576
    %664 = vmatpush.bf16.msra.mxu0 %v574
    %665 = vmatpush.bf16.msra.mxu0 %v572
    %666 = vmatmul.bf16.gmra.mxu0 %v420
    %v667 = vpop.f32.mrf.mxu0
    %v668 = vadd.f32 %v655, %v667
    %v669 = vpop.f32.mrf.mxu0
    %670 = vdwg.mxu0
    %v671 = vmax.f32 %v642, 0.0
    %v672 = vmax.f32 %v668, 0.0
    %v673 = vpack.c.bf16 %v671, %v671
    %v674 = vpack.c.bf16 %v672, %v672
    %v675 = vld [vmem:[#allocation13] sm:$0xf]
    %v676 = vld [vmem:[#allocation13 + $0x4] sm:$0xf]
    %v677 = vld [vmem:[#allocation13 + $0x8] sm:$0xf]
    %v678 = vld [vmem:[#allocation13 + $0xc] sm:$0xf]
    %v679 = vld [vmem:[#allocation13 + $0x10] sm:$0xf]
    %v680 = vld [vmem:[#allocation13 + $0x14] sm:$0xf]
    %v681 = vld [vmem:[#allocation13 + $0x18] sm:$0xf]
    %v682 = vld [vmem:[#allocation13 + $0x1c] sm:$0xf]
    %v683 = vld [vmem:[#allocation13 + $0x20] sm:$0xf]
    %v684 = vld [vmem:[#allocation13 + $0x24] sm:$0xf]
    %v685 = vld [vmem:[#allocation13 + $0x28] sm:$0xf]
    %v686 = vld [vmem:[#allocation13 + $0x2c] sm:$0xf]
    %v687 = vld [vmem:[#allocation13 + $0x30] sm:$0xf]
    %v688 = vld [vmem:[#allocation13 + $0x34] sm:$0xf]
    %v689 = vld [vmem:[#allocation13 + $0x38] sm:$0xf]
    %v690 = vld [vmem:[#allocation13 + $0x3c] sm:$0xf]
    %v691 = vld [vmem:[#allocation13 + $0x40] sm:$0xf]
    %v692 = vld [vmem:[#allocation13 + $0x44] sm:$0xf]
    %v693 = vld [vmem:[#allocation13 + $0x48] sm:$0xf]
    %v694 = vld [vmem:[#allocation13 + $0x4c] sm:$0xf]
    %v695 = vld [vmem:[#allocation13 + $0x50] sm:$0xf]
    %v696 = vld [vmem:[#allocation13 + $0x54] sm:$0xf]
    %v697 = vld [vmem:[#allocation13 + $0x58] sm:$0xf]
    %v698 = vld [vmem:[#allocation13 + $0x5c] sm:$0xf]
    %v699 = vld [vmem:[#allocation13 + $0x60] sm:$0xf]
    %v700 = vld [vmem:[#allocation13 + $0x64] sm:$0xf]
    %v701 = vld [vmem:[#allocation13 + $0x68] sm:$0xf]
    %v702 = vld [vmem:[#allocation13 + $0x6c] sm:$0xf]
    %v703 = vld [vmem:[#allocation13 + $0x70] sm:$0xf]
    %v704 = vld [vmem:[#allocation13 + $0x74] sm:$0xf]
    %v705 = vld [vmem:[#allocation13 + $0x78] sm:$0xf]
    %v706 = vld [vmem:[#allocation13 + $0x7c] sm:$0xf]
    %v707 = vld [vmem:[%s10] sm:$0x1]
    %v709 = vperm.slane %v707, 0
    %v743 = vunpack.c.l.b16 %v675
    %v744 = vunpack.c.l.b16 %v676
    %v745 = vunpack.c.l.b16 %v677
    %v746 = vunpack.c.l.b16 %v678
    %v747 = vunpack.c.l.b16 %v679
    %v748 = vunpack.c.l.b16 %v680
    %v749 = vunpack.c.l.b16 %v681
    %v750 = vunpack.c.l.b16 %v682
    %v751 = vunpack.c.l.b16 %v683
    %v752 = vunpack.c.l.b16 %v684
    %v753 = vunpack.c.l.b16 %v685
    %v754 = vunpack.c.l.b16 %v686
    %v755 = vunpack.c.l.b16 %v687
    %v756 = vunpack.c.l.b16 %v688
    %v757 = vunpack.c.l.b16 %v689
    %v758 = vunpack.c.l.b16 %v690
    %v759 = vunpack.c.l.b16 %v691
    %v760 = vunpack.c.l.b16 %v692
    %v761 = vunpack.c.l.b16 %v693
    %v762 = vunpack.c.l.b16 %v694
    %v763 = vunpack.c.l.b16 %v695
    %v764 = vunpack.c.l.b16 %v696
    %v765 = vunpack.c.l.b16 %v697
    %v766 = vunpack.c.l.b16 %v698
    %v767 = vunpack.c.l.b16 %v699
    %v768 = vunpack.c.l.b16 %v700
    %v769 = vunpack.c.l.b16 %v701
    %v770 = vunpack.c.l.b16 %v702
    %v771 = vunpack.c.l.b16 %v703
    %v772 = vunpack.c.l.b16 %v704
    %v773 = vunpack.c.l.b16 %v705
    %v774 = vunpack.c.l.b16 %v706
    %v775 = vpack.c.b16 %v744, %v743
    %v776 = vpack.c.b16 %v746, %v745
    %v777 = vpack.c.b16 %v748, %v747
    %v778 = vpack.c.b16 %v750, %v749
    %v779 = vpack.c.b16 %v752, %v751
    %v780 = vpack.c.b16 %v754, %v753
    %v781 = vpack.c.b16 %v756, %v755
    %v782 = vpack.c.b16 %v758, %v757
    %v783 = vpack.c.b16 %v760, %v759
    %v784 = vpack.c.b16 %v762, %v761
    %v785 = vpack.c.b16 %v764, %v763
    %v786 = vpack.c.b16 %v766, %v765
    %v787 = vpack.c.b16 %v768, %v767
    %v788 = vpack.c.b16 %v770, %v769
    %v789 = vpack.c.b16 %v772, %v771
    %v790 = vpack.c.b16 %v774, %v773
    %807 = vmatpush.bf16.msra.mxu0 %v782
    %808 = vmatpush.bf16.msra.mxu0 %v781
    %809 = vmatpush.bf16.msra.mxu0 %v780
    %810 = vmatpush.bf16.msra.mxu0 %v779
    %811 = vmatpush.bf16.msra.mxu0 %v778
    %812 = vmatpush.bf16.msra.mxu0 %v777
    %813 = vmatpush.bf16.msra.mxu0 %v776
    %814 = vmatpush.bf16.msra.mxu0 %v775
    %815 = vmatmul.bf16.gmra.mxu0 %v673
    %v816 = vpop.f32.mrf.mxu0
    %v817 = vadd.f32 %v709, %v816
    %v818 = vpop.f32.mrf.mxu0
    %819 = vdwg.mxu0
    %820 = vmatpush.bf16.msra.mxu0 %v790
    %821 = vmatpush.bf16.msra.mxu0 %v789
    %822 = vmatpush.bf16.msra.mxu0 %v788
    %823 = vmatpush.bf16.msra.mxu0 %v787
    %824 = vmatpush.bf16.msra.mxu0 %v786
    %825 = vmatpush.bf16.msra.mxu0 %v785
    %826 = vmatpush.bf16.msra.mxu0 %v784
    %827 = vmatpush.bf16.msra.mxu0 %v783
    %828 = vmatmul.bf16.gmra.mxu0 %v674
    %v829 = vpop.f32.mrf.mxu0
    %v830 = vadd.f32 %v817, %v829
    %v831 = vpop.f32.mrf.mxu0
    %832 = vdwg.mxu0
    %v833 = vmax.f32 %v830, 0.0
    %v834 = vpack.c.bf16 %v833, %v833
    %v835 = vld [vmem:[#allocation14] sm:$0xf]
    %v836 = vld [vmem:[#allocation14 + $0x4] sm:$0xf]
    %v837 = vld [vmem:[#allocation14 + $0x8] sm:$0xf]
    %v838 = vld [vmem:[#allocation14 + $0xc] sm:$0xf]
    %v839 = vld [vmem:[#allocation14 + $0x10] sm:$0xf]
    %v840 = vld [vmem:[#allocation14 + $0x14] sm:$0xf]
    %v841 = vld [vmem:[#allocation14 + $0x18] sm:$0xf]
    %v842 = vld [vmem:[#allocation14 + $0x1c] sm:$0xf]
    %v843 = vld [vmem:[#allocation14 + $0x20] sm:$0xf]
    %v844 = vld [vmem:[#allocation14 + $0x24] sm:$0xf]
    %v845 = vld [vmem:[#allocation14 + $0x28] sm:$0xf]
    %v846 = vld [vmem:[#allocation14 + $0x2c] sm:$0xf]
    %v847 = vld [vmem:[#allocation14 + $0x30] sm:$0xf]
    %v848 = vld [vmem:[#allocation14 + $0x34] sm:$0xf]
    %v849 = vld [vmem:[#allocation14 + $0x38] sm:$0xf]
    %v850 = vld [vmem:[#allocation14 + $0x3c] sm:$0xf]
    %v851 = vld [vmem:[%s12] sm:$0x1]
    %v853 = vperm.slane %v851, 0
    %v871 = vunpack.c.l.b16 %v835
    %v872 = vunpack.c.l.b16 %v836
    %v873 = vunpack.c.l.b16 %v837
    %v874 = vunpack.c.l.b16 %v838
    %v875 = vunpack.c.l.b16 %v839
    %v876 = vunpack.c.l.b16 %v840
    %v877 = vunpack.c.l.b16 %v841
    %v878 = vunpack.c.l.b16 %v842
    %v879 = vunpack.c.l.b16 %v843
    %v880 = vunpack.c.l.b16 %v844
    %v881 = vunpack.c.l.b16 %v845
    %v882 = vunpack.c.l.b16 %v846
    %v883 = vunpack.c.l.b16 %v847
    %v884 = vunpack.c.l.b16 %v848
    %v885 = vunpack.c.l.b16 %v849
    %v886 = vunpack.c.l.b16 %v850
    %v887 = vpack.c.b16 %v872, %v871
    %v888 = vpack.c.b16 %v874, %v873
    %v889 = vpack.c.b16 %v876, %v875
    %v890 = vpack.c.b16 %v878, %v877
    %v891 = vpack.c.b16 %v880, %v879
    %v892 = vpack.c.b16 %v882, %v881
    %v893 = vpack.c.b16 %v884, %v883
    %v894 = vpack.c.b16 %v886, %v885
    %903 = vmatpush.bf16.msra.mxu0 %v894
    %904 = vmatpush.bf16.msra.mxu0 %v893
    %905 = vmatpush.bf16.msra.mxu0 %v892
    %906 = vmatpush.bf16.msra.mxu0 %v891
    %907 = vmatpush.bf16.msra.mxu0 %v890
    %908 = vmatpush.bf16.msra.mxu0 %v889
    %909 = vmatpush.bf16.msra.mxu0 %v888
    %910 = vmatpush.bf16.msra.mxu0 %v887
    %911 = vmatmul.bf16.gmra.mxu0 %v834
    %v912 = vpop.f32.mrf.mxu0
    %v913 = vadd.f32 %v853, %v912
    %v914 = vpop.f32.mrf.mxu0
    %915 = vdwg.mxu0
    %v916 = vmax.f32 %v913, 0.0
    %v917 = vld [vmem:[%s13] sm:$0x1]
    %v919 = vperm.slane %v917, 0
    %v921 = vmul.f32 %v916, %v919
    %922 = vadd.xlane.f32.xlu0 %v921
    %v923 = vpop.xlane.xlu0 %922
    %v924 = vld [vmem:[#allocation2] sm:$0x1]
    %v926 = vperm.slane %v924, 0
    %v928 = vadd.f32 %v923, %v926
    %v929 = vand.u32 2147483647, %v928
    %v930 = vsub.f32 0.0, %v929
    %v931 = vmul.f32 %v930, 1.442695
    %v932 = vpow.pop %v931
    %v933 = vadd.f32 %v932, 1.0
    %v934 = vrcp.pop %v933
    %vm935 = vcmp.ge.f32.partialorder %v928, 0.0
    %v936 = vmul.f32 %v932, %v934
    %v937 = vsel %vm935, %v934, %v936
    %vm938 = vcmask 7168
    %939 = vst.msk [vmem:[%s15] sm:$0xff] %vm938, %v937
    // Predicated region
    $region94: #{tpu_custom_call.1} parent=1 // pred_check
      _
    $region95: #{tpu_custom_call.1} parent=1 // pred_check_branch
      %941 = sbr.rel (0) target = $region97
    $region96: #{tpu_custom_call.1} parent=1 // pred_region
      _
    $region97: #{tpu_custom_call.1} parent=1 // pred_fallthru
      _
    // Predicated region
    $region98: #{tpu_custom_call.1} parent=1 // pred_check
      _
    $region99: #{tpu_custom_call.1} parent=1 // pred_check_branch
      %943 = sbr.rel (0) target = $region101
    $region100: #{tpu_custom_call.1} parent=1 // pred_region
      _
    $region101: #{tpu_custom_call.1} parent=1 // pred_fallthru
      _
    %944 = vsyncpa [#allocation4], 1
    %945 = vsyncpa [#allocation6], 1
    %946 = vsyncpa [#allocation9], 1
    %947 = vsyncpa [#allocation12], 1
    %948 = vsyncpa [#allocation15], 1

</llo_original>
